<compile_context>
chip_gen: v7x
topology: tpu7x:2x2x1
jax: 0.10.0
libtpu: 0.0.40
codegen_flags: <defaults>
</compile_context>

<pallas_src>
import functools

import jax
import jax.numpy as jnp
from jax.experimental import pallas as pl
from jax.experimental.pallas import tpu as pltpu


def _round_up(x: int, m: int) -> int:
    return (x + m - 1) // m * m


def _mlp_dict_kernel(x_ref, w1_ref, b1_ref, w2_ref, b2_ref,
                     hidden_ref, logits_ref):
    # hidden = relu(x @ W1 + b1)   (bf16 operands, f32 MXU accumulation)
    h = jnp.dot(x_ref[...], w1_ref[...], preferred_element_type=jnp.float32)
    h = jnp.maximum(h + b1_ref[...], 0.0)          # b1 is [1, Hp], broadcasts
    hidden_ref[...] = h.astype(hidden_ref.dtype)

    # logits = hidden @ W2 + b2
    o = jnp.dot(h.astype(w2_ref.dtype), w2_ref[...],
                preferred_element_type=jnp.float32)
    logits_ref[...] = (o + b2_ref[...]).astype(logits_ref.dtype)


@functools.partial(jax.jit, static_argnames=("batch_tile",))
def dict_to_list_model(x, w1, b1, w2, b2, *, batch_tile=128):
    """Runs the inner module `m` (MLP returning a dict) inside a single Pallas
    kernel and returns list(res.values()) == [hidden, logits]."""
    B, D_in = x.shape
    H = w1.shape[1]
    D_out = w2.shape[1]

    # Lane-dense padding (feature dims -> multiples of 128) + batch tiling.
    Dp = _round_up(D_in, 128)
    Hp = _round_up(H, 128)
    Op = _round_up(D_out, 128)
    TB = min(batch_tile, _round_up(B, 8))
    Bp = _round_up(B, TB)
    n_tiles = Bp // TB

    f32, bf16 = jnp.float32, jnp.bfloat16

    # Zero padding is semantics-preserving: padded K columns contribute 0,
    # padded H columns give relu(0)=0 and hit zero rows of W2.
    xp = jnp.pad(x, ((0, Bp - B), (0, Dp - D_in))).astype(bf16)
    w1p = jnp.pad(w1, ((0, Dp - D_in), (0, Hp - H))).astype(bf16)
    w2p = jnp.pad(w2, ((0, Hp - H), (0, Op - D_out))).astype(bf16)
    b1p = jnp.pad(b1.reshape(1, H), ((0, 0), (0, Hp - H))).astype(f32)
    b2p = jnp.pad(b2.reshape(1, D_out), ((0, 0), (0, Op - D_out))).astype(f32)

    flops = 2 * Bp * (Dp * Hp + Hp * Op)
    bytes_accessed = ((xp.size + w1p.size + w2p.size) * 2
                      + (b1p.size + b2p.size) * 4
                      + Bp * (Hp + Op) * 4)

    # VMEM need: double-buffered x/hidden/logits tiles + resident weights/biases.
    vmem_bytes = (2 * (TB * Dp * 2 + TB * Hp * 4 + TB * Op * 4)
                  + 2 * (Dp * Hp + Hp * Op) * 2
                  + (Hp + Op) * 4)
    vmem_limit = min(max(4 * vmem_bytes, 16 * 1024 * 1024), 32 * 1024 * 1024)

    hidden_p, logits_p = pl.pallas_call(
        _mlp_dict_kernel,
        out_shape=(
            jax.ShapeDtypeStruct((Bp, Hp), f32),
            jax.ShapeDtypeStruct((Bp, Op), f32),
        ),
        grid_spec=pl.GridSpec(
            grid=(n_tiles,),
            in_specs=[
                pl.BlockSpec((TB, Dp), lambda i: (i, 0)),   # x: batch-tiled
                pl.BlockSpec((Dp, Hp), lambda i: (0, 0)),   # W1: VMEM-resident
                pl.BlockSpec((1, Hp), lambda i: (0, 0)),    # b1: loaded once
                pl.BlockSpec((Hp, Op), lambda i: (0, 0)),   # W2: VMEM-resident
                pl.BlockSpec((1, Op), lambda i: (0, 0)),    # b2: loaded once
            ],
            out_specs=(
                pl.BlockSpec((TB, Hp), lambda i: (i, 0)),   # lane-dense stores
                pl.BlockSpec((TB, Op), lambda i: (i, 0)),
            ),
        ),
        compiler_params=pltpu.CompilerParams(
            dimension_semantics=("parallel",),   # megacore sharding on v7x
            vmem_limit_bytes=vmem_limit,
        ),
        cost_estimate=pl.CostEstimate(
            flops=flops, transcendentals=0, bytes_accessed=bytes_accessed),
    )(xp, w1p, b1p, w2p, b2p)

    hidden = hidden_p[:B, :H]
    logits = logits_p[:B, :D_out]

    # dict -> list(values()):  {"hidden": ..., "logits": ...}
    res = {"hidden": hidden, "logits": logits}
    return list(res.values())


if __name__ == "__main__":
    key = jax.random.PRNGKey(0)
    k_x, k_w1, k_b1, k_w2, k_b2 = jax.random.split(key, 5)

    # Small but lane-dense / MXU-friendly demo shapes: batch > tile so the
    # grid really pipelines (grid=(4,)), feature dims are multiples of 128.
    B, D_in, H, D_out = 512, 128, 128, 128

    x = jax.random.normal(k_x, (B, D_in), dtype=jnp.float32)
    # Deterministic synthetic parameters (no checkpoint load).
    w1 = jax.random.normal(k_w1, (D_in, H), dtype=jnp.float32) * 0.1
    b1 = jax.random.normal(k_b1, (H,), dtype=jnp.float32) * 0.1
    w2 = jax.random.normal(k_w2, (H, D_out), dtype=jnp.float32) * 0.1
    b2 = jax.random.normal(k_b2, (D_out,), dtype=jnp.float32) * 0.1

    outs = dict_to_list_model(x, w1, b1, w2, b2)
    outs = [jax.block_until_ready(o) for o in outs]

    # Reference in plain JAX, mimicking the kernel's bf16-operand path.
    xb = x.astype(jnp.bfloat16).astype(jnp.float32)
    w1b = w1.astype(jnp.bfloat16).astype(jnp.float32)
    w2b = w2.astype(jnp.bfloat16).astype(jnp.float32)
    h_ref = jnp.maximum(xb @ w1b + b1, 0.0)
    l_ref = h_ref.astype(jnp.bfloat16).astype(jnp.float32) @ w2b + b2

    assert isinstance(outs, list) and len(outs) == 2
    assert outs[0].shape == (B, H) and outs[1].shape == (B, D_out)
    assert jnp.allclose(outs[0], h_ref, atol=1e-2, rtol=1e-2), "hidden mismatch"
    assert jnp.allclose(outs[1], l_ref, atol=1e-2, rtol=1e-2), "logits mismatch"

    print("KERNEL_OK")
</pallas_src>

<mosaic_0001>
module attributes {stable_mosaic.version = 11 : i64} {
  func.func @_mlp_dict_kernel(%arg0: i32, %arg1: memref<128x128xbf16, #tpu.memory_space<vmem>>, %arg2: memref<128x128xbf16, #tpu.memory_space<vmem>>, %arg3: memref<1x128xf32, #tpu.memory_space<vmem>>, %arg4: memref<128x128xbf16, #tpu.memory_space<vmem>>, %arg5: memref<1x128xf32, #tpu.memory_space<vmem>>, %arg6: memref<128x128xf32, #tpu.memory_space<vmem>>, %arg7: memref<128x128xf32, #tpu.memory_space<vmem>>) attributes {dimension_semantics = [#tpu.dimension_semantics<parallel>], iteration_bounds = array<i64: 4>, scalar_prefetch = 0 : i64, scratch_operands = 0 : i64, tpu.core_type = #tpu.core_type<tc>, window_params = [{transform_indices = @transform_0, window_bounds = array<i64: 128, 128>}, {pipeline_mode = #tpu.pipeline_mode<synchronous>, transform_indices = @transform_1, window_bounds = array<i64: 128, 128>}, {pipeline_mode = #tpu.pipeline_mode<synchronous>, transform_indices = @transform_2, window_bounds = array<i64: 1, 128>}, {pipeline_mode = #tpu.pipeline_mode<synchronous>, transform_indices = @transform_3, window_bounds = array<i64: 128, 128>}, {pipeline_mode = #tpu.pipeline_mode<synchronous>, transform_indices = @transform_4, window_bounds = array<i64: 1, 128>}, {transform_indices = @transform_5, window_bounds = array<i64: 128, 128>}, {transform_indices = @transform_6, window_bounds = array<i64: 128, 128>}]} {
    %c0 = arith.constant 0 : index
    %c0_0 = arith.constant 0 : index
    %0 = vector.load %arg1[%c0, %c0_0] : memref<128x128xbf16, #tpu.memory_space<vmem>>, vector<128x128xbf16>
    %c0_1 = arith.constant 0 : index
    %c0_2 = arith.constant 0 : index
    %1 = vector.load %arg2[%c0_1, %c0_2] : memref<128x128xbf16, #tpu.memory_space<vmem>>, vector<128x128xbf16>
    %cst = arith.constant dense<0.000000e+00> : vector<128x128xf32>
    %2 = tpu.matmul %0, %1, %cst {dimension_numbers = #tpu.dot_dimension_numbers<[1], [0], [0], [1], [0, 0, 1, 1], [], []>} : vector<128x128xbf16>, vector<128x128xbf16>, vector<128x128xf32> -> vector<128x128xf32>
    %c0_3 = arith.constant 0 : index
    %c0_4 = arith.constant 0 : index
    %3 = vector.load %arg3[%c0_3, %c0_4] : memref<1x128xf32, #tpu.memory_space<vmem>>, vector<1x128xf32>
    %4 = vector.broadcast %3 : vector<1x128xf32> to vector<128x128xf32>
    %5 = arith.addf %2, %4 : vector<128x128xf32>
    %cst_5 = arith.constant 0.000000e+00 : f32
    %6 = vector.broadcast %cst_5 : f32 to vector<128x128xf32>
    %7 = arith.maximumf %5, %6 : vector<128x128xf32>
    %c0_6 = arith.constant 0 : index
    %c0_7 = arith.constant 0 : index
    %8 = vector.load %arg6[%c0_6, %c0_7] : memref<128x128xf32, #tpu.memory_space<vmem>>, vector<128x128xf32>
    tpu.vector_store %arg6[%c0_6, %c0_7], %7 {strides = array<i32>} : memref<128x128xf32, #tpu.memory_space<vmem>>, vector<128x128xf32>,
    %9 = arith.truncf %7 : vector<128x128xf32> to vector<128x128xbf16>
    %c0_8 = arith.constant 0 : index
    %c0_9 = arith.constant 0 : index
    %10 = vector.load %arg4[%c0_8, %c0_9] : memref<128x128xbf16, #tpu.memory_space<vmem>>, vector<128x128xbf16>
    %cst_10 = arith.constant dense<0.000000e+00> : vector<128x128xf32>
    %11 = tpu.matmul %9, %10, %cst_10 {dimension_numbers = #tpu.dot_dimension_numbers<[1], [0], [0], [1], [0, 0, 1, 1], [], []>} : vector<128x128xbf16>, vector<128x128xbf16>, vector<128x128xf32> -> vector<128x128xf32>
    %c0_11 = arith.constant 0 : index
    %c0_12 = arith.constant 0 : index
    %12 = vector.load %arg5[%c0_11, %c0_12] : memref<1x128xf32, #tpu.memory_space<vmem>>, vector<1x128xf32>
    %13 = vector.broadcast %12 : vector<1x128xf32> to vector<128x128xf32>
    %14 = arith.addf %11, %13 : vector<128x128xf32>
    %c0_13 = arith.constant 0 : index
    %c0_14 = arith.constant 0 : index
    %15 = vector.load %arg7[%c0_13, %c0_14] : memref<128x128xf32, #tpu.memory_space<vmem>>, vector<128x128xf32>
    tpu.vector_store %arg7[%c0_13, %c0_14], %14 {strides = array<i32>} : memref<128x128xf32, #tpu.memory_space<vmem>>, vector<128x128xf32>,
    return
  }
  func.func @transform_0(%arg0: i32) -> (i32, i32) {
    %c0_i32 = arith.constant 0 : i32
    %c0_i32_0 = arith.constant 0 : i32
    return %arg0, %c0_i32 : i32, i32
  }
  func.func @transform_1(%arg0: i32) -> (i32, i32) {
    %c0_i32 = arith.constant 0 : i32
    %c0_i32_0 = arith.constant 0 : i32
    %c0_i32_1 = arith.constant 0 : i32
    return %c0_i32, %c0_i32_0 : i32, i32
  }
  func.func @transform_2(%arg0: i32) -> (i32, i32) {
    %c0_i32 = arith.constant 0 : i32
    %c0_i32_0 = arith.constant 0 : i32
    %c0_i32_1 = arith.constant 0 : i32
    return %c0_i32, %c0_i32_0 : i32, i32
  }
  func.func @transform_3(%arg0: i32) -> (i32, i32) {
    %c0_i32 = arith.constant 0 : i32
    %c0_i32_0 = arith.constant 0 : i32
    %c0_i32_1 = arith.constant 0 : i32
    return %c0_i32, %c0_i32_0 : i32, i32
  }
  func.func @transform_4(%arg0: i32) -> (i32, i32) {
    %c0_i32 = arith.constant 0 : i32
    %c0_i32_0 = arith.constant 0 : i32
    %c0_i32_1 = arith.constant 0 : i32
    return %c0_i32, %c0_i32_0 : i32, i32
  }
  func.func @transform_5(%arg0: i32) -> (i32, i32) {
    %c0_i32 = arith.constant 0 : i32
    %c0_i32_0 = arith.constant 0 : i32
    return %arg0, %c0_i32 : i32, i32
  }
  func.func @transform_6(%arg0: i32) -> (i32, i32) {
    %c0_i32 = arith.constant 0 : i32
    %c0_i32_0 = arith.constant 0 : i32
    return %arg0, %c0_i32 : i32, i32
  }
}

</mosaic_0001>

<llo_original>
// kernel: dict_to_list_model.1
$region0: #{dict_to_list_model.1}
  #allocation0 [shape = 'u32[]', space=smem, size = 0x4, offset = 0x4, fixed_abs, tag = 'smem constant byte address 0x4 - core index']
  #allocation1 [shape = 'u32[144,128]{1,0:T(1,128)}', space=vmem, size = 0x12000, scoped, tag = 'internal scratch']
  %s0 = inlined_call_operand.vmem [shape: bf16[512,128], index: 0, kind: input, shape index: {}]
  %s1 = inlined_call_operand.vmem [shape: bf16[128,128], index: 1, kind: input, shape index: {}]
  %s2 = inlined_call_operand.vmem [shape: f32[1,128], index: 2, kind: input, shape index: {}]
  %s3 = inlined_call_operand.vmem [shape: bf16[128,128], index: 3, kind: input, shape index: {}]
  %s4 = inlined_call_operand.vmem [shape: f32[1,128], index: 4, kind: input, shape index: {}]
  %s5 = inlined_call_operand.hbm [shape: f32[512,128], index: 5, kind: output, shape index: {0}]
  %s6 = inlined_call_operand.hbm [shape: f32[512,128], index: 6, kind: output, shape index: {1}]
  %7 = xla_tuple %s5, %s6
  %s8 = sld [smem:[#allocation0]]
  $region61: #{dict_to_list_model.1} parent=0
    _
  %s10 = ssub.s32 1, %s8
  %s11 = scalar_select 0, %s10, %s8
  $region1: #{dict_to_list_model.1} parent=0
    #allocation2 [shape = 'u8[131072]{0}', space=vmem, size = 0x20000, scoped, tag = 'output window, operand 0']
    #allocation3 [shape = 's32[2]{0}', space=sflag, size = 0x8, scoped, tag = 'scoped memory for dict_to_list_model.1']
    #allocation4 [shape = 'u8[131072]{0}', space=vmem, size = 0x20000, scoped, tag = 'output window, operand 1']
    #allocation5 [shape = 's32[2]{0}', space=sflag, size = 0x8, scoped, tag = 'scoped memory for dict_to_list_model.1']
    %12 = vsyncpa [#allocation3], 0
    %s13 = scalar_lea.sflag [#allocation3], 1
    %14 = vsyncpa %s13, 0
    %15 = vsyncpa [#allocation5], 0
    %s16 = scalar_lea.sflag [#allocation5], 1
    %17 = vsyncpa %s16, 0
    loop: start=0, step=1, limit=6
    $region2: #{dict_to_list_model.1} parent=1 // loop_pre_header
      _
    $region3: #{dict_to_list_model.1} parent=1 // loop_header
      %s19 = sphi 0, %s23
      %p20 = scmp.ge.s32.totalorder %s19, 6
      %s29 = sphi 0, %s31
      %s32 = sphi 0, %s29
      %s33 = sphi 0, %s32
      %s49 = sphi 0, %s33
      %s53 = sphi 0, %s53
      %s55 = sphi 0, %s53
      %s56 = sphi 0, %s55
      %s70 = sphi 0, %s56
      %s74 = sphi 0, %s74
      %s76 = sphi 0, %s74
      %s77 = sphi 0, %s76
      %s91 = sphi 0, %s77
      %s95 = sphi 0, %s95
      %s97 = sphi 0, %s95
      %s98 = sphi 0, %s97
      %s112 = sphi 0, %s98
      %s116 = sphi 0, %s116
      %s118 = sphi 0, %s116
      %s119 = sphi 0, %s118
      %s133 = sphi 0, %s119
      %s139 = sphi 0, %s141
      %s142 = sphi 0, %s139
      %s143 = sphi 0, %s142
      %s159 = sphi 0, %s143
      %s165 = sphi 0, %s167
      %s168 = sphi 0, %s165
      %s169 = sphi 0, %s168
      %s185 = sphi 0, %s169
    $region4: #{dict_to_list_model.1} parent=1 // loop_header_branch
      %22 = sbr.rel (%p20) target = $region8
    $region5: #{dict_to_list_model.1} parent=1 // loop_body
      %s24 = ssub.s32 %s19, 1
      %s25 = ssub.s32 %s19, 2
      %s26 = sadd.s32 %s19, 1
      %s27 = ssub.s32 %s19, %s26
      %p28 = scmp.eq.s32.totalorder %s27, 0
      %s30 = sadd.s32 %s29, 1
      %s31 = scalar_select %p28, %s29, %s30
      %p34 = pneg %p28
      %p35 = scmp.eq.s32.totalorder %s19, 3
      %p36 = por %p34, %p35
      %p37 = scmp.ne.s32.totalorder %s29, %s32
      %p38 = scmp.eq.s32.totalorder %s19, 0
      %p39 = por %p37, %p38
      %p40 = scmp.ne.s32.totalorder %s29, %s32
      %p41 = scmp.eq.s32.totalorder %s24, 3
      %p42 = por %p40, %p41
      %p43 = scmp.ne.s32.totalorder %s32, %s33
      %p44 = scmp.eq.s32.totalorder %s24, 0
      %p45 = por %p43, %p44
      %p46 = scmp.ne.s32.totalorder %s32, %s33
      %p47 = scmp.eq.s32.totalorder %s25, 3
      %p48 = por %p46, %p47
      %p50 = scmp.ne.s32.totalorder %s33, %s49
      %p51 = scmp.eq.s32.totalorder %s25, 0
      %p52 = por %p50, %p51
      %s54 = sadd.s32 %s53, 1
      %p57 = scmp.eq.s32.totalorder %s19, 3
      %p58 = scmp.ne.s32.totalorder %s53, %s55
      %p59 = scmp.eq.s32.totalorder %s19, 0
      %p60 = por %p58, %p59
      %p61 = scmp.ne.s32.totalorder %s53, %s55
      %p62 = scmp.eq.s32.totalorder %s24, 3
      %p63 = por %p61, %p62
      %p64 = scmp.ne.s32.totalorder %s55, %s56
      %p65 = scmp.eq.s32.totalorder %s24, 0
      %p66 = por %p64, %p65
      %p67 = scmp.ne.s32.totalorder %s55, %s56
      %p68 = scmp.eq.s32.totalorder %s25, 3
      %p69 = por %p67, %p68
      %p71 = scmp.ne.s32.totalorder %s56, %s70
      %p72 = scmp.eq.s32.totalorder %s25, 0
      %p73 = por %p71, %p72
      %s75 = sadd.s32 %s74, 1
      %p78 = scmp.eq.s32.totalorder %s19, 3
      %p79 = scmp.ne.s32.totalorder %s74, %s76
      %p80 = scmp.eq.s32.totalorder %s19, 0
      %p81 = por %p79, %p80
      %p82 = scmp.ne.s32.totalorder %s74, %s76
      %p83 = scmp.eq.s32.totalorder %s24, 3
      %p84 = por %p82, %p83
      %p85 = scmp.ne.s32.totalorder %s76, %s77
      %p86 = scmp.eq.s32.totalorder %s24, 0
      %p87 = por %p85, %p86
      %p88 = scmp.ne.s32.totalorder %s76, %s77
      %p89 = scmp.eq.s32.totalorder %s25, 3
      %p90 = por %p88, %p89
      %p92 = scmp.ne.s32.totalorder %s77, %s91
      %p93 = scmp.eq.s32.totalorder %s25, 0
      %p94 = por %p92, %p93
      %s96 = sadd.s32 %s95, 1
      %p99 = scmp.eq.s32.totalorder %s19, 3
      %p100 = scmp.ne.s32.totalorder %s95, %s97
      %p101 = scmp.eq.s32.totalorder %s19, 0
      %p102 = por %p100, %p101
      %p103 = scmp.ne.s32.totalorder %s95, %s97
      %p104 = scmp.eq.s32.totalorder %s24, 3
      %p105 = por %p103, %p104
      %p106 = scmp.ne.s32.totalorder %s97, %s98
      %p107 = scmp.eq.s32.totalorder %s24, 0
      %p108 = por %p106, %p107
      %p109 = scmp.ne.s32.totalorder %s97, %s98
      %p110 = scmp.eq.s32.totalorder %s25, 3
      %p111 = por %p109, %p110
      %p113 = scmp.ne.s32.totalorder %s98, %s112
      %p114 = scmp.eq.s32.totalorder %s25, 0
      %p115 = por %p113, %p114
      %s117 = sadd.s32 %s116, 1
      %p120 = scmp.eq.s32.totalorder %s19, 3
      %p121 = scmp.ne.s32.totalorder %s116, %s118
      %p122 = scmp.eq.s32.totalorder %s19, 0
      %p123 = por %p121, %p122
      %p124 = scmp.ne.s32.totalorder %s116, %s118
      %p125 = scmp.eq.s32.totalorder %s24, 3
      %p126 = por %p124, %p125
      %p127 = scmp.ne.s32.totalorder %s118, %s119
      %p128 = scmp.eq.s32.totalorder %s24, 0
      %p129 = por %p127, %p128
      %p130 = scmp.ne.s32.totalorder %s118, %s119
      %p131 = scmp.eq.s32.totalorder %s25, 3
      %p132 = por %p130, %p131
      %p134 = scmp.ne.s32.totalorder %s119, %s133
      %p135 = scmp.eq.s32.totalorder %s25, 0
      %p136 = por %p134, %p135
      %s137 = ssub.s32 %s19, %s26
      %p138 = scmp.eq.s32.totalorder %s137, 0
      %s140 = sadd.s32 %s139, 1
      %s141 = scalar_select %p138, %s139, %s140
      %p144 = pneg %p138
      %p145 = scmp.eq.s32.totalorder %s19, 3
      %p146 = por %p144, %p145
      %p147 = scmp.ne.s32.totalorder %s139, %s142
      %p148 = scmp.eq.s32.totalorder %s19, 0
      %p149 = por %p147, %p148
      %p150 = scmp.ne.s32.totalorder %s139, %s142
      %p151 = scmp.eq.s32.totalorder %s24, 3
      %p152 = por %p150, %p151
      %p153 = scmp.ne.s32.totalorder %s142, %s143
      %p154 = scmp.eq.s32.totalorder %s24, 0
      %p155 = por %p153, %p154
      %p156 = scmp.ne.s32.totalorder %s142, %s143
      %p157 = scmp.eq.s32.totalorder %s25, 3
      %p158 = por %p156, %p157
      %p160 = scmp.ne.s32.totalorder %s143, %s159
      %p161 = scmp.eq.s32.totalorder %s25, 0
      %p162 = por %p160, %p161
      %s163 = ssub.s32 %s19, %s26
      %p164 = scmp.eq.s32.totalorder %s163, 0
      %s166 = sadd.s32 %s165, 1
      %s167 = scalar_select %p164, %s165, %s166
      %p170 = pneg %p164
      %p171 = scmp.eq.s32.totalorder %s19, 3
      %p172 = por %p170, %p171
      %p173 = scmp.ne.s32.totalorder %s165, %s168
      %p174 = scmp.eq.s32.totalorder %s19, 0
      %p175 = por %p173, %p174
      %p176 = scmp.ne.s32.totalorder %s165, %s168
      %p177 = scmp.eq.s32.totalorder %s24, 3
      %p178 = por %p176, %p177
      %p179 = scmp.ne.s32.totalorder %s168, %s169
      %p180 = scmp.eq.s32.totalorder %s24, 0
      %p181 = por %p179, %p180
      %p182 = scmp.ne.s32.totalorder %s168, %s169
      %p183 = scmp.eq.s32.totalorder %s25, 3
      %p184 = por %p182, %p183
      %p186 = scmp.ne.s32.totalorder %s169, %s185
      %p187 = scmp.eq.s32.totalorder %s25, 0
      %p188 = por %p186, %p187
      %p189 = scmp.le.s32.totalorder 1, %s19
      %p190 = scmp.lt.s32.totalorder %s19, 5
      %p191 = pnand %p189, %p190
      %p192 = pneg %p191
      // Predicated region
      $region9: #{dict_to_list_model.1} parent=5 // pred_check
        _
      $region10: #{dict_to_list_model.1} parent=5 // pred_check_branch
        %194 = sbr.rel (%p191) target = $region12
      $region11: #{dict_to_list_model.1} parent=5 // pred_region
        %s195 = ssub.s32 %s19, 1
        // Predicated region
        $region13: #{dict_to_list_model.1} parent=11 // pred_check
          %p196 = pneg %p66
        $region14: #{dict_to_list_model.1} parent=11 // pred_check_branch
          %198 = sbr.rel (%p196) target = $region16
        $region15: #{dict_to_list_model.1} parent=11 // pred_region
          _
        $region16: #{dict_to_list_model.1} parent=11 // pred_fallthru
          _
        // Predicated region
        $region17: #{dict_to_list_model.1} parent=11 // pred_check
          %p199 = pneg %p87
        $region18: #{dict_to_list_model.1} parent=11 // pred_check_branch
          %201 = sbr.rel (%p199) target = $region20
        $region19: #{dict_to_list_model.1} parent=11 // pred_region
          _
        $region20: #{dict_to_list_model.1} parent=11 // pred_fallthru
          _
        // Predicated region
        $region21: #{dict_to_list_model.1} parent=11 // pred_check
          %p202 = pneg %p108
        $region22: #{dict_to_list_model.1} parent=11 // pred_check_branch
          %204 = sbr.rel (%p202) target = $region24
        $region23: #{dict_to_list_model.1} parent=11 // pred_region
          _
        $region24: #{dict_to_list_model.1} parent=11 // pred_fallthru
          _
        // Predicated region
        $region25: #{dict_to_list_model.1} parent=11 // pred_check
          %p205 = pneg %p129
        $region26: #{dict_to_list_model.1} parent=11 // pred_check_branch
          %207 = sbr.rel (%p205) target = $region28
        $region27: #{dict_to_list_model.1} parent=11 // pred_region
          _
        $region28: #{dict_to_list_model.1} parent=11 // pred_fallthru
          _
      $region12: #{dict_to_list_model.1} parent=5 // pred_fallthru
        _
      %p208 = scmp.lt.s32.totalorder %s19, 4
      // Predicated region
      $region29: #{dict_to_list_model.1} parent=5 // pred_check
        %p209 = pneg %p208
      $region30: #{dict_to_list_model.1} parent=5 // pred_check_branch
        %211 = sbr.rel (%p209) target = $region32
      $region31: #{dict_to_list_model.1} parent=5 // pred_region
        // Predicated region
        $region33: #{dict_to_list_model.1} parent=31 // pred_check
          %p212 = pneg %p39
        $region34: #{dict_to_list_model.1} parent=31 // pred_check_branch
          %214 = sbr.rel (%p212) target = $region36
        $region35: #{dict_to_list_model.1} parent=31 // pred_region
          %s215 = smul.u32 16, %s19
          %p216 = scmp.lt.s32.totalorder %s215, 63
          %s217 = scalar_select %p216, %s215, 63
          %s218 = smul.addr %s217, 4
          %s219 = scalar_lea.vmem %s0, %s218
          %s220 = smul.u32 16, %s19
        $region36: #{dict_to_list_model.1} parent=31 // pred_fallthru
          _
      $region32: #{dict_to_list_model.1} parent=5 // pred_fallthru
        _
      %p221 = scmp.le.s32.totalorder 1, %s19
      %p222 = scmp.lt.s32.totalorder %s19, 5
      %p223 = pnand %p221, %p222
      %p224 = pneg %p223
      // Predicated region
      $region37: #{dict_to_list_model.1} parent=5 // pred_check
        _
      $region38: #{dict_to_list_model.1} parent=5 // pred_check_branch
        %226 = sbr.rel (%p223) target = $region40
      $region39: #{dict_to_list_model.1} parent=5 // pred_region
        %s227 = ssub.s32 %s19, 1
        %s228 = smul.u32 16, %s24
        %p229 = scmp.lt.s32.totalorder %s228, 63
        %s230 = scalar_select %p229, %s228, 63
        %s231 = smul.addr %s230, 4
        %s232 = scalar_lea.vmem %s0, %s231
        %p233 = pneg %p45
        %p234 = pneg %p42
        %p235 = pneg %p66
        %p236 = pneg %p63
        %p237 = pneg %p87
        %p238 = pneg %p84
        %p239 = pneg %p108
        %p240 = pneg %p105
        %p241 = pneg %p129
        %p242 = pneg %p126
        %p243 = pneg %p155
        %p244 = pneg %p152
        %s245 = sand.u32 %s142, 1
        %s246 = scalar_lea.sflag [#allocation3], %s245
        %s247 = sand.u32 %s142, 1
        %s248 = smul.addr %s247, 128
        %s249 = scalar_lea.vmem [#allocation2], %s248
        %p250 = pneg %p181
        %p251 = pneg %p178
        %s252 = sand.u32 %s168, 1
        %s253 = scalar_lea.sflag [#allocation5], %s252
        %s254 = sand.u32 %s168, 1
        %s255 = smul.addr %s254, 128
        %s256 = scalar_lea.vmem [#allocation4], %s255
        %s257 = smul.u32 16, %s24
        %p258 = scmp.lt.s32.totalorder %s257, 63
        %s259 = scalar_select %p258, %s257, 63
        %s260 = smul.addr %s259, 4
        %s261 = scalar_lea.vmem %s0, %s260
        %s262 = smul.u32 16, %s24
        %s263 = smul.u32 16, %s24
        %s264 = smul.u32 16, %s24
        %v266 = vld [vmem:[%s261] sm:$0xf]
        %v267 = vld [vmem:[%s261 + $0x4] sm:$0xf]
        %v268 = vld [vmem:[%s261 + $0x8] sm:$0xf]
        %v269 = vld [vmem:[%s261 + $0xc] sm:$0xf]
        %v270 = vld [vmem:[%s261 + $0x10] sm:$0xf]
        %v271 = vld [vmem:[%s261 + $0x14] sm:$0xf]
        %v272 = vld [vmem:[%s261 + $0x18] sm:$0xf]
        %v273 = vld [vmem:[%s261 + $0x1c] sm:$0xf]
        %v274 = vld [vmem:[%s261 + $0x20] sm:$0xf]
        %v275 = vld [vmem:[%s261 + $0x24] sm:$0xf]
        %v276 = vld [vmem:[%s261 + $0x28] sm:$0xf]
        %v277 = vld [vmem:[%s261 + $0x2c] sm:$0xf]
        %v278 = vld [vmem:[%s261 + $0x30] sm:$0xf]
        %v279 = vld [vmem:[%s261 + $0x34] sm:$0xf]
        %v280 = vld [vmem:[%s261 + $0x38] sm:$0xf]
        %v281 = vld [vmem:[%s261 + $0x3c] sm:$0xf]
        %v282 = vld [vmem:[%s1] sm:$0xf]
        %v283 = vld [vmem:[%s1 + $0x4] sm:$0xf]
        %v284 = vld [vmem:[%s1 + $0x8] sm:$0xf]
        %v285 = vld [vmem:[%s1 + $0xc] sm:$0xf]
        %v286 = vld [vmem:[%s1 + $0x10] sm:$0xf]
        %v287 = vld [vmem:[%s1 + $0x14] sm:$0xf]
        %v288 = vld [vmem:[%s1 + $0x18] sm:$0xf]
        %v289 = vld [vmem:[%s1 + $0x1c] sm:$0xf]
        %v290 = vld [vmem:[%s1 + $0x20] sm:$0xf]
        %v291 = vld [vmem:[%s1 + $0x24] sm:$0xf]
        %v292 = vld [vmem:[%s1 + $0x28] sm:$0xf]
        %v293 = vld [vmem:[%s1 + $0x2c] sm:$0xf]
        %v294 = vld [vmem:[%s1 + $0x30] sm:$0xf]
        %v295 = vld [vmem:[%s1 + $0x34] sm:$0xf]
        %v296 = vld [vmem:[%s1 + $0x38] sm:$0xf]
        %v297 = vld [vmem:[%s1 + $0x3c] sm:$0xf]
        %v298 = vld [vmem:[%s2] sm:$0x1]
        %v300 = vlaneseq
        %v301 = vshrl.u32 %v300, 7
        %v302 = vsub.s32 0, %v301
        %v303 = vrot.slane %v298, %v302
        %v321 = vunpack.c.l.b16 %v266
        %v322 = vunpack.c.l.b16 %v267
        %v323 = vunpack.c.l.b16 %v268
        %v324 = vunpack.c.l.b16 %v269
        %v325 = vunpack.c.l.b16 %v270
        %v326 = vunpack.c.l.b16 %v271
        %v327 = vunpack.c.l.b16 %v272
        %v328 = vunpack.c.l.b16 %v273
        %v329 = vunpack.c.l.b16 %v274
        %v330 = vunpack.c.l.b16 %v275
        %v331 = vunpack.c.l.b16 %v276
        %v332 = vunpack.c.l.b16 %v277
        %v333 = vunpack.c.l.b16 %v278
        %v334 = vunpack.c.l.b16 %v279
        %v335 = vunpack.c.l.b16 %v280
        %v336 = vunpack.c.l.b16 %v281
        %v337 = vpack.c.b16 %v322, %v321
        %v338 = vpack.c.b16 %v324, %v323
        %v339 = vpack.c.b16 %v326, %v325
        %v340 = vpack.c.b16 %v328, %v327
        %v341 = vpack.c.b16 %v330, %v329
        %v342 = vpack.c.b16 %v332, %v331
        %v343 = vpack.c.b16 %v334, %v333
        %v344 = vpack.c.b16 %v336, %v335
        %v369 = vunpack.c.l.b16 %v282
        %v370 = vunpack.c.l.b16 %v283
        %v371 = vunpack.c.l.b16 %v284
        %v372 = vunpack.c.l.b16 %v285
        %v373 = vunpack.c.l.b16 %v286
        %v374 = vunpack.c.l.b16 %v287
        %v375 = vunpack.c.l.b16 %v288
        %v376 = vunpack.c.l.b16 %v289
        %v377 = vunpack.c.l.b16 %v290
        %v378 = vunpack.c.l.b16 %v291
        %v379 = vunpack.c.l.b16 %v292
        %v380 = vunpack.c.l.b16 %v293
        %v381 = vunpack.c.l.b16 %v294
        %v382 = vunpack.c.l.b16 %v295
        %v383 = vunpack.c.l.b16 %v296
        %v384 = vunpack.c.l.b16 %v297
        %v385 = vpack.c.b16 %v370, %v369
        %v386 = vpack.c.b16 %v372, %v371
        %v387 = vpack.c.b16 %v374, %v373
        %v388 = vpack.c.b16 %v376, %v375
        %v389 = vpack.c.b16 %v378, %v377
        %v390 = vpack.c.b16 %v380, %v379
        %v391 = vpack.c.b16 %v382, %v381
        %v392 = vpack.c.b16 %v384, %v383
        %401 = vmatprep.subr.bf16.mxu0 0
        %402 = vmatpush1.bf16.msra.mxu0 %v385
        %403 = vmatprep.subr.bf16.mxu0 0
        %404 = vmatpush1.bf16.msra.mxu0 %v386
        %405 = vmatprep.subr.bf16.mxu0 0
        %406 = vmatpush1.bf16.msra.mxu0 %v387
        %407 = vmatprep.subr.bf16.mxu0 0
        %408 = vmatpush1.bf16.msra.mxu0 %v388
        %409 = vmatprep.subr.bf16.mxu0 0
        %410 = vmatpush1.bf16.msra.mxu0 %v389
        %411 = vmatprep.subr.bf16.mxu0 0
        %412 = vmatpush1.bf16.msra.mxu0 %v390
        %413 = vmatprep.subr.bf16.mxu0 0
        %414 = vmatpush1.bf16.msra.mxu0 %v391
        %415 = vmatprep.subr.bf16.mxu0 0
        %416 = vmatpush1.bf16.msra.mxu0 %v392
        %417 = vmatprep.subr.bf16.mxu0 0
        %418 = vmatpush1.bf16.msra.mxu0 0
        %419 = vmatprep.subr.bf16.mxu0 0
        %420 = vmatpush1.bf16.msra.mxu0 0
        %421 = vmatprep.subr.bf16.mxu0 0
        %422 = vmatpush1.bf16.msra.mxu0 0
        %423 = vmatprep.subr.bf16.mxu0 0
        %424 = vmatpush1.bf16.msra.mxu0 0
        %425 = vmatprep.subr.bf16.mxu0 0
        %426 = vmatpush1.bf16.msra.mxu0 0
        %427 = vmatprep.subr.bf16.mxu0 0
        %428 = vmatpush1.bf16.msra.mxu0 0
        %429 = vmatprep.subr.bf16.mxu0 0
        %430 = vmatpush1.bf16.msra.mxu0 0
        %431 = vmatprep.subr.bf16.mxu0 0
        %432 = vmatpush1.bf16.msra.mxu0 0
        %433 = vmatprep.mubr.bf16.mxu0 0
        %434 = vmatmul.mubr.bf16.gmra.mrb[0].mxu0 %v337
        %v435 = vpop.f32.mrb[0].mxu0
        %v436 = vadd.f32 %v303, %v435
        %v437 = vpop.f32.mrb[0].mxu0
        %v438 = vpop.f32.mrb[0].mxu0
        %v439 = vadd.f32 %v303, %v438
        %v440 = vpop.f32.mrb[0].mxu0
        %441 = vmatprep.mubr.bf16.mxu0 0
        %442 = vmatmul.mubr.bf16.gmra.mrb[0].mxu0 %v338
        %v443 = vpop.f32.mrb[0].mxu0
        %v444 = vadd.f32 %v303, %v443
        %v445 = vpop.f32.mrb[0].mxu0
        %v446 = vpop.f32.mrb[0].mxu0
        %v447 = vadd.f32 %v303, %v446
        %v448 = vpop.f32.mrb[0].mxu0
        %449 = vmatprep.mubr.bf16.mxu0 0
        %450 = vmatmul.mubr.bf16.gmra.mrb[0].mxu0 %v339
        %v451 = vpop.f32.mrb[0].mxu0
        %v452 = vadd.f32 %v303, %v451
        %v453 = vpop.f32.mrb[0].mxu0
        %v454 = vpop.f32.mrb[0].mxu0
        %v455 = vadd.f32 %v303, %v454
        %v456 = vpop.f32.mrb[0].mxu0
        %457 = vmatprep.mubr.bf16.mxu0 0
        %458 = vmatmul.mubr.bf16.gmra.mrb[0].mxu0 %v340
        %v459 = vpop.f32.mrb[0].mxu0
        %v460 = vadd.f32 %v303, %v459
        %v461 = vpop.f32.mrb[0].mxu0
        %v462 = vpop.f32.mrb[0].mxu0
        %v463 = vadd.f32 %v303, %v462
        %v464 = vpop.f32.mrb[0].mxu0
        %465 = vmatprep.mubr.bf16.mxu0 0
        %466 = vmatmul.mubr.bf16.gmra.mrb[0].mxu0 %v341
        %v467 = vpop.f32.mrb[0].mxu0
        %v468 = vadd.f32 %v303, %v467
        %v469 = vpop.f32.mrb[0].mxu0
        %v470 = vpop.f32.mrb[0].mxu0
        %v471 = vadd.f32 %v303, %v470
        %v472 = vpop.f32.mrb[0].mxu0
        %473 = vmatprep.mubr.bf16.mxu0 0
        %474 = vmatmul.mubr.bf16.gmra.mrb[0].mxu0 %v342
        %v475 = vpop.f32.mrb[0].mxu0
        %v476 = vadd.f32 %v303, %v475
        %v477 = vpop.f32.mrb[0].mxu0
        %v478 = vpop.f32.mrb[0].mxu0
        %v479 = vadd.f32 %v303, %v478
        %v480 = vpop.f32.mrb[0].mxu0
        %481 = vmatprep.mubr.bf16.mxu0 0
        %482 = vmatmul.mubr.bf16.gmra.mrb[0].mxu0 %v343
        %v483 = vpop.f32.mrb[0].mxu0
        %v484 = vadd.f32 %v303, %v483
        %v485 = vpop.f32.mrb[0].mxu0
        %v486 = vpop.f32.mrb[0].mxu0
        %v487 = vadd.f32 %v303, %v486
        %v488 = vpop.f32.mrb[0].mxu0
        %489 = vmatprep.mubr.bf16.mxu0 0
        %490 = vmatmul.mubr.bf16.gmra.mrb[0].mxu0 %v344
        %v491 = vpop.f32.mrb[0].mxu0
        %v492 = vadd.f32 %v303, %v491
        %v493 = vpop.f32.mrb[0].mxu0
        %v494 = vpop.f32.mrb[0].mxu0
        %v495 = vadd.f32 %v303, %v494
        %v496 = vpop.f32.mrb[0].mxu0
        %497 = vdwg.mxu0
        %v498 = vmax.f32 %v436, 0.0
        %v499 = vmax.f32 %v439, 0.0
        %v500 = vmax.f32 %v444, 0.0
        %v501 = vmax.f32 %v447, 0.0
        %v502 = vmax.f32 %v452, 0.0
        %v503 = vmax.f32 %v455, 0.0
        %v504 = vmax.f32 %v460, 0.0
        %v505 = vmax.f32 %v463, 0.0
        %v506 = vmax.f32 %v468, 0.0
        %v507 = vmax.f32 %v471, 0.0
        %v508 = vmax.f32 %v476, 0.0
        %v509 = vmax.f32 %v479, 0.0
        %v510 = vmax.f32 %v484, 0.0
        %v511 = vmax.f32 %v487, 0.0
        %v512 = vmax.f32 %v492, 0.0
        %v513 = vmax.f32 %v495, 0.0
        %514 = vst [vmem:[%s249] sm:$0xff] %v498
        %515 = vst [vmem:[%s249 + $0x8] sm:$0xff] %v499
        %516 = vst [vmem:[%s249 + $0x10] sm:$0xff] %v500
        %517 = vst [vmem:[%s249 + $0x18] sm:$0xff] %v501
        %518 = vst [vmem:[%s249 + $0x20] sm:$0xff] %v502
        %519 = vst [vmem:[%s249 + $0x28] sm:$0xff] %v503
        %520 = vst [vmem:[%s249 + $0x30] sm:$0xff] %v504
        %521 = vst [vmem:[%s249 + $0x38] sm:$0xff] %v505
        %522 = vst [vmem:[%s249 + $0x40] sm:$0xff] %v506
        %523 = vst [vmem:[%s249 + $0x48] sm:$0xff] %v507
        %524 = vst [vmem:[%s249 + $0x50] sm:$0xff] %v508
        %525 = vst [vmem:[%s249 + $0x58] sm:$0xff] %v509
        %526 = vst [vmem:[%s249 + $0x60] sm:$0xff] %v510
        %527 = vst [vmem:[%s249 + $0x68] sm:$0xff] %v511
        %528 = vst [vmem:[%s249 + $0x70] sm:$0xff] %v512
        %529 = vst [vmem:[%s249 + $0x78] sm:$0xff] %v513
        %v530 = vpack.c.bf16 %v499, %v498
        %v531 = vpack.c.bf16 %v501, %v500
        %v532 = vpack.c.bf16 %v503, %v502
        %v533 = vpack.c.bf16 %v505, %v504
        %v534 = vpack.c.bf16 %v507, %v506
        %v535 = vpack.c.bf16 %v509, %v508
        %v536 = vpack.c.bf16 %v511, %v510
        %v537 = vpack.c.bf16 %v513, %v512
        %v538 = vld [vmem:[%s3] sm:$0xf]
        %v539 = vld [vmem:[%s3 + $0x4] sm:$0xf]
        %v540 = vld [vmem:[%s3 + $0x8] sm:$0xf]
        %v541 = vld [vmem:[%s3 + $0xc] sm:$0xf]
        %v542 = vld [vmem:[%s3 + $0x10] sm:$0xf]
        %v543 = vld [vmem:[%s3 + $0x14] sm:$0xf]
        %v544 = vld [vmem:[%s3 + $0x18] sm:$0xf]
        %v545 = vld [vmem:[%s3 + $0x1c] sm:$0xf]
        %v546 = vld [vmem:[%s3 + $0x20] sm:$0xf]
        %v547 = vld [vmem:[%s3 + $0x24] sm:$0xf]
        %v548 = vld [vmem:[%s3 + $0x28] sm:$0xf]
        %v549 = vld [vmem:[%s3 + $0x2c] sm:$0xf]
        %v550 = vld [vmem:[%s3 + $0x30] sm:$0xf]
        %v551 = vld [vmem:[%s3 + $0x34] sm:$0xf]
        %v552 = vld [vmem:[%s3 + $0x38] sm:$0xf]
        %v553 = vld [vmem:[%s3 + $0x3c] sm:$0xf]
        %v554 = vld [vmem:[%s4] sm:$0x1]
        %v556 = vlaneseq
        %v557 = vshrl.u32 %v556, 7
        %v558 = vsub.s32 0, %v557
        %v559 = vrot.slane %v554, %v558
        %v577 = vunpack.c.l.b16 %v538
        %v578 = vunpack.c.l.b16 %v539
        %v579 = vunpack.c.l.b16 %v540
        %v580 = vunpack.c.l.b16 %v541
        %v581 = vunpack.c.l.b16 %v542
        %v582 = vunpack.c.l.b16 %v543
        %v583 = vunpack.c.l.b16 %v544
        %v584 = vunpack.c.l.b16 %v545
        %v585 = vunpack.c.l.b16 %v546
        %v586 = vunpack.c.l.b16 %v547
        %v587 = vunpack.c.l.b16 %v548
        %v588 = vunpack.c.l.b16 %v549
        %v589 = vunpack.c.l.b16 %v550
        %v590 = vunpack.c.l.b16 %v551
        %v591 = vunpack.c.l.b16 %v552
        %v592 = vunpack.c.l.b16 %v553
        %v593 = vpack.c.b16 %v578, %v577
        %v594 = vpack.c.b16 %v580, %v579
        %v595 = vpack.c.b16 %v582, %v581
        %v596 = vpack.c.b16 %v584, %v583
        %v597 = vpack.c.b16 %v586, %v585
        %v598 = vpack.c.b16 %v588, %v587
        %v599 = vpack.c.b16 %v590, %v589
        %v600 = vpack.c.b16 %v592, %v591
        %609 = vmatprep.subr.bf16.mxu0 0
        %610 = vmatpush1.bf16.msra.mxu0 %v593
        %611 = vmatprep.subr.bf16.mxu0 0
        %612 = vmatpush1.bf16.msra.mxu0 %v594
        %613 = vmatprep.subr.bf16.mxu0 0
        %614 = vmatpush1.bf16.msra.mxu0 %v595
        %615 = vmatprep.subr.bf16.mxu0 0
        %616 = vmatpush1.bf16.msra.mxu0 %v596
        %617 = vmatprep.subr.bf16.mxu0 0
        %618 = vmatpush1.bf16.msra.mxu0 %v597
        %619 = vmatprep.subr.bf16.mxu0 0
        %620 = vmatpush1.bf16.msra.mxu0 %v598
        %621 = vmatprep.subr.bf16.mxu0 0
        %622 = vmatpush1.bf16.msra.mxu0 %v599
        %623 = vmatprep.subr.bf16.mxu0 0
        %624 = vmatpush1.bf16.msra.mxu0 %v600
        %625 = vmatprep.subr.bf16.mxu0 0
        %626 = vmatpush1.bf16.msra.mxu0 0
        %627 = vmatprep.subr.bf16.mxu0 0
        %628 = vmatpush1.bf16.msra.mxu0 0
        %629 = vmatprep.subr.bf16.mxu0 0
        %630 = vmatpush1.bf16.msra.mxu0 0
        %631 = vmatprep.subr.bf16.mxu0 0
        %632 = vmatpush1.bf16.msra.mxu0 0
        %633 = vmatprep.subr.bf16.mxu0 0
        %634 = vmatpush1.bf16.msra.mxu0 0
        %635 = vmatprep.subr.bf16.mxu0 0
        %636 = vmatpush1.bf16.msra.mxu0 0
        %637 = vmatprep.subr.bf16.mxu0 0
        %638 = vmatpush1.bf16.msra.mxu0 0
        %639 = vmatprep.subr.bf16.mxu0 0
        %640 = vmatpush1.bf16.msra.mxu0 0
        %641 = vmatprep.mubr.bf16.mxu0 0
        %642 = vmatmul.mubr.bf16.gmra.mrb[0].mxu0 %v530
        %v643 = vpop.f32.mrb[0].mxu0
        %v644 = vadd.f32 %v559, %v643
        %v645 = vpop.f32.mrb[0].mxu0
        %v646 = vpop.f32.mrb[0].mxu0
        %v647 = vadd.f32 %v559, %v646
        %v648 = vpop.f32.mrb[0].mxu0
        %649 = vmatprep.mubr.bf16.mxu0 0
        %650 = vmatmul.mubr.bf16.gmra.mrb[0].mxu0 %v531
        %v651 = vpop.f32.mrb[0].mxu0
        %v652 = vadd.f32 %v559, %v651
        %v653 = vpop.f32.mrb[0].mxu0
        %v654 = vpop.f32.mrb[0].mxu0
        %v655 = vadd.f32 %v559, %v654
        %v656 = vpop.f32.mrb[0].mxu0
        %657 = vmatprep.mubr.bf16.mxu0 0
        %658 = vmatmul.mubr.bf16.gmra.mrb[0].mxu0 %v532
        %v659 = vpop.f32.mrb[0].mxu0
        %v660 = vadd.f32 %v559, %v659
        %v661 = vpop.f32.mrb[0].mxu0
        %v662 = vpop.f32.mrb[0].mxu0
        %v663 = vadd.f32 %v559, %v662
        %v664 = vpop.f32.mrb[0].mxu0
        %665 = vmatprep.mubr.bf16.mxu0 0
        %666 = vmatmul.mubr.bf16.gmra.mrb[0].mxu0 %v533
        %v667 = vpop.f32.mrb[0].mxu0
        %v668 = vadd.f32 %v559, %v667
        %v669 = vpop.f32.mrb[0].mxu0
        %v670 = vpop.f32.mrb[0].mxu0
        %v671 = vadd.f32 %v559, %v670
        %v672 = vpop.f32.mrb[0].mxu0
        %673 = vmatprep.mubr.bf16.mxu0 0
        %674 = vmatmul.mubr.bf16.gmra.mrb[0].mxu0 %v534
        %v675 = vpop.f32.mrb[0].mxu0
        %v676 = vadd.f32 %v559, %v675
        %v677 = vpop.f32.mrb[0].mxu0
        %v678 = vpop.f32.mrb[0].mxu0
        %v679 = vadd.f32 %v559, %v678
        %v680 = vpop.f32.mrb[0].mxu0
        %681 = vmatprep.mubr.bf16.mxu0 0
        %682 = vmatmul.mubr.bf16.gmra.mrb[0].mxu0 %v535
        %v683 = vpop.f32.mrb[0].mxu0
        %v684 = vadd.f32 %v559, %v683
        %v685 = vpop.f32.mrb[0].mxu0
        %v686 = vpop.f32.mrb[0].mxu0
        %v687 = vadd.f32 %v559, %v686
        %v688 = vpop.f32.mrb[0].mxu0
        %689 = vmatprep.mubr.bf16.mxu0 0
        %690 = vmatmul.mubr.bf16.gmra.mrb[0].mxu0 %v536
        %v691 = vpop.f32.mrb[0].mxu0
        %v692 = vadd.f32 %v559, %v691
        %v693 = vpop.f32.mrb[0].mxu0
        %v694 = vpop.f32.mrb[0].mxu0
        %v695 = vadd.f32 %v559, %v694
        %v696 = vpop.f32.mrb[0].mxu0
        %697 = vmatprep.mubr.bf16.mxu0 0
        %698 = vmatmul.mubr.bf16.gmra.mrb[0].mxu0 %v537
        %v699 = vpop.f32.mrb[0].mxu0
        %v700 = vadd.f32 %v559, %v699
        %v701 = vpop.f32.mrb[0].mxu0
        %v702 = vpop.f32.mrb[0].mxu0
        %v703 = vadd.f32 %v559, %v702
        %v704 = vpop.f32.mrb[0].mxu0
        %705 = vdwg.mxu0
        %706 = vst [vmem:[%s256] sm:$0xff] %v644
        %707 = vst [vmem:[%s256 + $0x8] sm:$0xff] %v647
        %708 = vst [vmem:[%s256 + $0x10] sm:$0xff] %v652
        %709 = vst [vmem:[%s256 + $0x18] sm:$0xff] %v655
        %710 = vst [vmem:[%s256 + $0x20] sm:$0xff] %v660
        %711 = vst [vmem:[%s256 + $0x28] sm:$0xff] %v663
        %712 = vst [vmem:[%s256 + $0x30] sm:$0xff] %v668
        %713 = vst [vmem:[%s256 + $0x38] sm:$0xff] %v671
        %714 = vst [vmem:[%s256 + $0x40] sm:$0xff] %v676
        %715 = vst [vmem:[%s256 + $0x48] sm:$0xff] %v679
        %716 = vst [vmem:[%s256 + $0x50] sm:$0xff] %v684
        %717 = vst [vmem:[%s256 + $0x58] sm:$0xff] %v687
        %718 = vst [vmem:[%s256 + $0x60] sm:$0xff] %v692
        %719 = vst [vmem:[%s256 + $0x68] sm:$0xff] %v695
        %720 = vst [vmem:[%s256 + $0x70] sm:$0xff] %v700
        %721 = vst [vmem:[%s256 + $0x78] sm:$0xff] %v703
        %s722 = sand.u32 %s142, 1
        %s723 = scalar_lea.sflag [#allocation3], %s722
        %s724 = sand.u32 %s142, 1
        %s725 = smul.addr %s724, 128
        %s726 = scalar_lea.vmem [#allocation2], %s725
        %s727 = sand.u32 %s168, 1
        %s728 = scalar_lea.sflag [#allocation5], %s727
        %s729 = sand.u32 %s168, 1
        %s730 = smul.addr %s729, 128
        %s731 = scalar_lea.vmem [#allocation4], %s730
        // Predicated region
        $region41: #{dict_to_list_model.1} parent=39 // pred_check
          %p732 = pneg %p152
        $region42: #{dict_to_list_model.1} parent=39 // pred_check_branch
          %734 = sbr.rel (%p732) target = $region44
        $region43: #{dict_to_list_model.1} parent=39 // pred_region
          %s735 = smul.u32 16, %s24
          %s737 = ssub.s32 2048, 2048
          %738 = vsyncadd %s723, %s737
          %s739 = smul.addr %s735, 128
          %s740 = scalar_lea.hbm %s5, %s739
          %s741 = sshll.u32 %s726, 4
          %s742 = int_to_ptr.vmem [resolvable:$true] %s741
          %747 = dma.vmem_to_hbm [thread:$0]  %s742, 2048, %s740, %s723, 128, 128, 8
        $region44: #{dict_to_list_model.1} parent=39 // pred_fallthru
          _
        // Predicated region
        $region45: #{dict_to_list_model.1} parent=39 // pred_check
          %p748 = pneg %p178
        $region46: #{dict_to_list_model.1} parent=39 // pred_check_branch
          %750 = sbr.rel (%p748) target = $region48
        $region47: #{dict_to_list_model.1} parent=39 // pred_region
          %s751 = smul.u32 16, %s24
          %s753 = ssub.s32 2048, 2048
          %754 = vsyncadd %s728, %s753
          %s755 = smul.addr %s751, 128
          %s756 = scalar_lea.hbm %s6, %s755
          %s757 = sshll.u32 %s731, 4
          %s758 = int_to_ptr.vmem [resolvable:$true] %s757
          %763 = dma.vmem_to_hbm [thread:$0]  %s758, 2048, %s756, %s728, 128, 128, 8
        $region48: #{dict_to_list_model.1} parent=39 // pred_fallthru
          _
      $region40: #{dict_to_list_model.1} parent=5 // pred_fallthru
        _
      %p764 = scmp.le.s32.totalorder 2, %s19
      // Predicated region
      $region49: #{dict_to_list_model.1} parent=5 // pred_check
        %p765 = pneg %p764
      $region50: #{dict_to_list_model.1} parent=5 // pred_check_branch
        %767 = sbr.rel (%p765) target = $region52
      $region51: #{dict_to_list_model.1} parent=5 // pred_region
        %s768 = ssub.s32 %s19, 2
        // Predicated region
        $region53: #{dict_to_list_model.1} parent=51 // pred_check
          %p769 = pneg %p158
        $region54: #{dict_to_list_model.1} parent=51 // pred_check_branch
          %771 = sbr.rel (%p769) target = $region56
        $region55: #{dict_to_list_model.1} parent=51 // pred_region
          %s772 = sand.u32 %s143, 1
          %s773 = scalar_lea.sflag [#allocation3], %s772
          %s774 = sand.u32 %s143, 1
          %s775 = smul.addr %s774, 128
          %s776 = scalar_lea.vmem [#allocation2], %s775
          %777 = dma.done %s773, 2048
        $region56: #{dict_to_list_model.1} parent=51 // pred_fallthru
          _
        // Predicated region
        $region57: #{dict_to_list_model.1} parent=51 // pred_check
          %p778 = pneg %p184
        $region58: #{dict_to_list_model.1} parent=51 // pred_check_branch
          %780 = sbr.rel (%p778) target = $region60
        $region59: #{dict_to_list_model.1} parent=51 // pred_region
          %s781 = sand.u32 %s169, 1
          %s782 = scalar_lea.sflag [#allocation5], %s781
          %s783 = sand.u32 %s169, 1
          %s784 = smul.addr %s783, 128
          %s785 = scalar_lea.vmem [#allocation4], %s784
          %786 = dma.done %s782, 2048
        $region60: #{dict_to_list_model.1} parent=51 // pred_fallthru
          _
      $region52: #{dict_to_list_model.1} parent=5 // pred_fallthru
        _
    $region6: #{dict_to_list_model.1} parent=1 // loop_footer
      %s23 = sadd.s32 1, %s19
    $region7: #{dict_to_list_model.1} parent=1 // loop_footer_branch
      %18 = sbr.rel target = $region3
    $region8: #{dict_to_list_model.1} parent=1 // loop_exit
      _
    %787 = vsyncpa [#allocation3], 1
    %s788 = scalar_lea.sflag [#allocation3], 1
    %789 = vsyncpa %s788, 1
    %790 = vsyncpa [#allocation5], 1
    %s791 = scalar_lea.sflag [#allocation5], 1
    %792 = vsyncpa %s791, 1

</llo_original>
